<compile_context>
chip_gen: v7x
topology: tpu7x:2x2x1
jax: 0.10.0
libtpu: 0.0.40
codegen_flags: <defaults>
</compile_context>

<pallas_src>
import jax
import jax.numpy as jnp
from jax.experimental import pallas as pl
from jax.experimental.pallas import tpu as pltpu


# ---------------------------------------------------------------------------
# Kernel
# ---------------------------------------------------------------------------
def _beta_policy_kernel(x_ref, opt_ref, hx_ref, cx_ref, pk_ref, out_ref):
    H = hx_ref.shape[-1]
    G = 4 * H
    Dx = x_ref.shape[-1]
    Do = opt_ref.shape[-1]
    D = Dx + Do

    def sig(v):
        # sigmoid via a single tanh EUP push (cheaper than exp + divide)
        return 0.5 * (jnp.tanh(0.5 * v) + 1.0)

    # ---- beta_pre_fc: Linear + ReLU, computed at full gate width G --------
    # (columns >= H of the packed W1/b1 rows are zero, so cols >= H of `pre`
    #  are exactly zero after the ReLU)
    pre = jnp.maximum(
        jnp.dot(x_ref[...], pk_ref[0:Dx, :], preferred_element_type=jnp.float32)
        + jnp.dot(opt_ref[...], pk_ref[Dx:D, :], preferred_element_type=jnp.float32)
        + pk_ref[D:D + 1, :],
        0.0)                                                   # (B, 4H)

    # ---- beta_rnn: one LSTM cell step (gate order i, f, g, o) --------------
    # W_ih^T is zero-padded to (4H, 4H) so `pre` is consumed full-width
    # (no lane slicing) and the two gate biases are pre-summed into one row.
    r0 = D + 1
    gates = (jnp.dot(pre, pk_ref[r0:r0 + G, :],
                     preferred_element_type=jnp.float32)
             + jnp.dot(hx_ref[...], pk_ref[r0 + G:r0 + G + H, :],
                       preferred_element_type=jnp.float32)
             + pk_ref[r0 + G + H:r0 + G + H + 1, :])           # (B, 4H)

    i = sig(gates[:, 0 * H:1 * H])
    f = sig(gates[:, 1 * H:2 * H])
    g = jnp.tanh(gates[:, 2 * H:3 * H])
    o = sig(gates[:, 3 * H:4 * H])
    cy = f * cx_ref[...] + i * g
    hy = o * jnp.tanh(cy)

    # ---- beta head: VPU multiply + lane reduce (no N=1 MXU pass) -----------
    hrow = r0 + G + H + 1
    wb = pk_ref[hrow:hrow + 1, 0:H]           # (1, H)
    bb = pk_ref[hrow:hrow + 1, H:H + 1]       # (1, 1)
    beta = sig(jnp.sum(hy * wb, axis=-1, keepdims=True) + bb)  # (B, 1)

    # ---- single lane-dense packed output: [hy | cy | beta | 0-pad] ---------
    out_ref[...] = jnp.zeros(out_ref.shape, out_ref.dtype)
    out_ref[:, 0:H] = hy
    out_ref[:, H:2 * H] = cy
    out_ref[:, 2 * H:2 * H + 1] = beta


# ---------------------------------------------------------------------------
# Parameter construction / packing
# ---------------------------------------------------------------------------
def init_params(key, value_size, hidden_size, option_dim):
    """Deterministic PyTorch-style uniform(-1/sqrt(fan_in)) init + packed buffer."""
    in_dim = value_size + option_dim
    ks = jax.random.split(key, 8)

    def u(k, shape, fan_in):
        bound = 1.0 / jnp.sqrt(jnp.float32(fan_in))
        return jax.random.uniform(k, shape, jnp.float32, -bound, bound)

    H = hidden_size
    p = dict(
        # pre-fc (stored transposed: [in, out])
        w1t=u(ks[0], (in_dim, H), in_dim),
        b1=u(ks[1], (1, H), in_dim),
        # LSTM (stored transposed: [in, 4H]), gate order i,f,g,o
        wiht=u(ks[2], (H, 4 * H), H),
        bih=u(ks[3], (1, 4 * H), H),
        whht=u(ks[4], (H, 4 * H), H),
        bhh=u(ks[5], (1, 4 * H), H),
        # beta head
        wbt=u(ks[6], (H, 1), H),
        bb=u(ks[7], (1, 1), H),
    )
    p["packed"] = pack_params(p)
    return p


def pack_params(p):
    """Pack all parameters into one (D + 5H + 3, 4H) f32 buffer (single DMA)."""
    H = p["whht"].shape[0]
    G = 4 * H
    D = p["w1t"].shape[0]

    def pad_cols(w):
        return jnp.pad(w.astype(jnp.float32), ((0, 0), (0, G - w.shape[-1])))

    wih_pad = jnp.concatenate(
        [p["wiht"].astype(jnp.float32), jnp.zeros((G - H, G), jnp.float32)], axis=0)

    head = jnp.zeros((1, G), jnp.float32)
    head = head.at[0, :H].set(p["wbt"][:, 0])
    head = head.at[0, H].set(p["bb"][0, 0])

    packed = jnp.concatenate([
        pad_cols(p["w1t"]),                 # rows [0, D)          : W1^T (zero-padded cols)
        pad_cols(p["b1"]),                  # row  D               : b1   (zero-padded cols)
        wih_pad,                            # rows [D+1, D+1+4H)   : W_ih^T zero-row-padded
        p["whht"].astype(jnp.float32),      # rows [.., ..+H)      : W_hh^T
        (p["bih"] + p["bhh"]).astype(jnp.float32),  # 1 row        : fused gate bias
        head,                               # 1 row                : [wb^T | bb | 0...]
    ], axis=0)
    return packed


# ---------------------------------------------------------------------------
# Wrapper
# ---------------------------------------------------------------------------
def beta_policy_forward(params, inp, option):
    """inp = (x, (hx, cx)); mirrors BetaPolicy.forward shape semantics."""
    x, (hx, cx) = inp

    # --- PyTorch shape normalization (glue, plain JAX) ---
    if x.ndim == 1:
        x = x[None, :]
    if option.ndim == 0:
        option = option[None, None]
    elif option.ndim == 1:
        option = option[None, :]
    if option.shape[0] == 1 and x.shape[0] > 1:
        option = jnp.broadcast_to(option, (x.shape[0], option.shape[-1]))

    squeeze_out = (hx.ndim == 1)
    hxm = hx[None, :] if hx.ndim == 1 else hx
    cxm = cx[None, :] if cx.ndim == 1 else cx

    x = x.astype(jnp.float32)
    option = option.astype(jnp.float32)
    hxm = hxm.astype(jnp.float32)
    cxm = cxm.astype(jnp.float32)

    B = x.shape[0]
    H = hxm.shape[-1]
    Dx = x.shape[-1]
    Do = option.shape[-1]
    packed = params["packed"]
    R, G = packed.shape
    OUT_W = max(128, -(-(2 * H + 1) // 128) * 128)   # lane-dense packed output width

    # Pad batch to a multiple of 8 (f32 sublanes); tile large batches over a grid.
    if B <= 128:
        Bp = ((B + 7) // 8) * 8
        tile_b = Bp
    else:
        tile_b = 128
        Bp = ((B + 127) // 128) * 128
    grid = (Bp // tile_b,)

    def pad_rows(a):
        return a if a.shape[0] == Bp else jnp.pad(a, ((0, Bp - a.shape[0]), (0, 0)))

    xp, op, hp, cp = pad_rows(x), pad_rows(option), pad_rows(hxm), pad_rows(cxm)

    out = pl.pallas_call(
        _beta_policy_kernel,
        out_shape=jax.ShapeDtypeStruct((Bp, OUT_W), jnp.float32),
        grid=grid,
        in_specs=[
            pl.BlockSpec((tile_b, Dx), lambda i: (i, 0)),
            pl.BlockSpec((tile_b, Do), lambda i: (i, 0)),
            pl.BlockSpec((tile_b, H), lambda i: (i, 0)),
            pl.BlockSpec((tile_b, H), lambda i: (i, 0)),
            pl.BlockSpec((R, G), lambda i: (0, 0)),          # packed params (one block)
        ],
        out_specs=pl.BlockSpec((tile_b, OUT_W), lambda i: (i, 0)),
        compiler_params=pltpu.CompilerParams(
            dimension_semantics=("parallel",)),
    )(xp, op, hp, cp, packed)

    hy = out[:B, 0:H]
    cy = out[:B, H:2 * H]
    beta = out[:B, 2 * H:2 * H + 1]

    # --- PyTorch squeeze-back semantics (batch==1 1-D inputs return 1-D states) ---
    if squeeze_out and B == 1:
        hy = hy[0]
        cy = cy[0]
        beta = beta[0]          # shape (1,), matching Linear on a 1-D input
    return beta, (hy, cy)


# ---------------------------------------------------------------------------
# Plain-JAX reference for numerical verification
# ---------------------------------------------------------------------------
def _reference_forward(params, inp, option):
    x, (hx, cx) = inp
    x2 = x[None, :] if x.ndim == 1 else x
    opt2 = option[None, :] if option.ndim == 1 else option
    xopt = jnp.concatenate([x2, opt2], axis=-1)
    hxm = hx[None, :] if hx.ndim == 1 else hx
    cxm = cx[None, :] if cx.ndim == 1 else cx
    H = hxm.shape[-1]

    pre = jnp.maximum(xopt @ params["w1t"] + params["b1"], 0.0)
    gates = (pre @ params["wiht"] + params["bih"]
             + hxm @ params["whht"] + params["bhh"])
    i = jax.nn.sigmoid(gates[:, 0 * H:1 * H])
    f = jax.nn.sigmoid(gates[:, 1 * H:2 * H])
    g = jnp.tanh(gates[:, 2 * H:3 * H])
    o = jax.nn.sigmoid(gates[:, 3 * H:4 * H])
    cy = f * cxm + i * g
    hy = o * jnp.tanh(cy)
    beta = jax.nn.sigmoid(hy @ params["wbt"] + params["bb"])
    return beta, hy, cy


# ---------------------------------------------------------------------------
if __name__ == "__main__":
    value_size, hidden_size, option_dim = 24, 32, 8

    key = jax.random.PRNGKey(0)
    k_par, k_x, k_opt, k_h, k_c, k_b = jax.random.split(key, 6)

    params = init_params(k_par, value_size, hidden_size, option_dim)

    # --- Case 1: single-step, single-sample (typical policy-head usage) ----
    x = jax.random.normal(k_x, (value_size,), jnp.float32)
    option = jax.random.normal(k_opt, (option_dim,), jnp.float32)
    hx = jax.random.normal(k_h, (hidden_size,), jnp.float32)
    cx = jax.random.normal(k_c, (hidden_size,), jnp.float32)

    beta, (hy, cy) = beta_policy_forward(params, (x, (hx, cx)), option)
    jax.block_until_ready((beta, hy, cy))

    beta_ref, hy_ref, cy_ref = _reference_forward(params, (x, (hx, cx)), option)
    assert beta.shape == (1,) and hy.shape == (hidden_size,) and cy.shape == (hidden_size,)
    assert jnp.allclose(beta, beta_ref[0], atol=1e-4, rtol=1e-4)
    assert jnp.allclose(hy, hy_ref[0], atol=1e-4, rtol=1e-4)
    assert jnp.allclose(cy, cy_ref[0], atol=1e-4, rtol=1e-4)

    # --- Case 2: batched 2-D inputs (exercises sublane padding + batch grid) ---
    B = 4
    kb = jax.random.split(k_b, 4)
    xb = jax.random.normal(kb[0], (B, value_size), jnp.float32)
    ob = jax.random.normal(kb[1], (B, option_dim), jnp.float32)
    hb = jax.random.normal(kb[2], (B, hidden_size), jnp.float32)
    cb = jax.random.normal(kb[3], (B, hidden_size), jnp.float32)

    beta_b, (hy_b, cy_b) = beta_policy_forward(params, (xb, (hb, cb)), ob)
    jax.block_until_ready((beta_b, hy_b, cy_b))

    beta_br, hy_br, cy_br = _reference_forward(params, (xb, (hb, cb)), ob)
    assert beta_b.shape == (B, 1) and hy_b.shape == (B, hidden_size)
    assert jnp.allclose(beta_b, beta_br, atol=1e-4, rtol=1e-4)
    assert jnp.allclose(hy_b, hy_br, atol=1e-4, rtol=1e-4)
    assert jnp.allclose(cy_b, cy_br, atol=1e-4, rtol=1e-4)

    print("KERNEL_OK")
</pallas_src>

<mosaic_0001>
module attributes {stable_mosaic.version = 11 : i64} {
  func.func @_beta_policy_kernel(%arg0: i32, %arg1: memref<8x24xf32, #tpu.memory_space<vmem>>, %arg2: memref<8x8xf32, #tpu.memory_space<vmem>>, %arg3: memref<8x32xf32, #tpu.memory_space<vmem>>, %arg4: memref<8x32xf32, #tpu.memory_space<vmem>>, %arg5: memref<195x128xf32, #tpu.memory_space<vmem>>, %arg6: memref<8x128xf32, #tpu.memory_space<vmem>>) attributes {dimension_semantics = [#tpu.dimension_semantics<parallel>], iteration_bounds = array<i64: 1>, scalar_prefetch = 0 : i64, scratch_operands = 0 : i64, tpu.core_type = #tpu.core_type<tc>, window_params = [{transform_indices = @transform_0, window_bounds = array<i64: 8, 24>}, {transform_indices = @transform_1, window_bounds = array<i64: 8, 8>}, {transform_indices = @transform_2, window_bounds = array<i64: 8, 32>}, {transform_indices = @transform_3, window_bounds = array<i64: 8, 32>}, {pipeline_mode = #tpu.pipeline_mode<synchronous>, transform_indices = @transform_4, window_bounds = array<i64: 195, 128>}, {transform_indices = @transform_5, window_bounds = array<i64: 8, 128>}]} {
    %c0 = arith.constant 0 : index
    %c0_0 = arith.constant 0 : index
    %0 = vector.load %arg1[%c0, %c0_0] : memref<8x24xf32, #tpu.memory_space<vmem>>, vector<8x24xf32>
    %c0_1 = arith.constant 0 : index
    %c0_2 = arith.constant 0 : index
    %1 = vector.load %arg5[%c0_1, %c0_2] : memref<195x128xf32, #tpu.memory_space<vmem>>, vector<24x128xf32>
    %cst = arith.constant dense<0.000000e+00> : vector<8x128xf32>
    %2 = tpu.matmul %0, %1, %cst {dimension_numbers = #tpu.dot_dimension_numbers<[1], [0], [0], [1], [0, 0, 1, 1], [], []>} : vector<8x24xf32>, vector<24x128xf32>, vector<8x128xf32> -> vector<8x128xf32>
    %c0_3 = arith.constant 0 : index
    %c0_4 = arith.constant 0 : index
    %3 = vector.load %arg2[%c0_3, %c0_4] : memref<8x8xf32, #tpu.memory_space<vmem>>, vector<8x8xf32>
    %c24 = arith.constant 24 : index
    %c0_5 = arith.constant 0 : index
    %4 = vector.load %arg5[%c24, %c0_5] : memref<195x128xf32, #tpu.memory_space<vmem>>, vector<8x128xf32>
    %cst_6 = arith.constant dense<0.000000e+00> : vector<8x128xf32>
    %5 = tpu.matmul %3, %4, %cst_6 {dimension_numbers = #tpu.dot_dimension_numbers<[1], [0], [0], [1], [0, 0, 1, 1], [], []>} : vector<8x8xf32>, vector<8x128xf32>, vector<8x128xf32> -> vector<8x128xf32>
    %6 = arith.addf %2, %5 : vector<8x128xf32>
    %c32 = arith.constant 32 : index
    %c0_7 = arith.constant 0 : index
    %7 = vector.load %arg5[%c32, %c0_7] : memref<195x128xf32, #tpu.memory_space<vmem>>, vector<1x128xf32>
    %8 = vector.broadcast %7 : vector<1x128xf32> to vector<8x128xf32>
    %9 = arith.addf %6, %8 : vector<8x128xf32>
    %cst_8 = arith.constant 0.000000e+00 : f32
    %10 = vector.broadcast %cst_8 : f32 to vector<8x128xf32>
    %11 = arith.maximumf %9, %10 : vector<8x128xf32>
    %c33 = arith.constant 33 : index
    %c0_9 = arith.constant 0 : index
    %12 = vector.load %arg5[%c33, %c0_9] : memref<195x128xf32, #tpu.memory_space<vmem>>, vector<128x128xf32>
    %cst_10 = arith.constant dense<0.000000e+00> : vector<8x128xf32>
    %13 = tpu.matmul %11, %12, %cst_10 {dimension_numbers = #tpu.dot_dimension_numbers<[1], [0], [0], [1], [0, 0, 1, 1], [], []>} : vector<8x128xf32>, vector<128x128xf32>, vector<8x128xf32> -> vector<8x128xf32>
    %c0_11 = arith.constant 0 : index
    %c0_12 = arith.constant 0 : index
    %14 = vector.load %arg3[%c0_11, %c0_12] : memref<8x32xf32, #tpu.memory_space<vmem>>, vector<8x32xf32>
    %c161 = arith.constant 161 : index
    %c0_13 = arith.constant 0 : index
    %15 = vector.load %arg5[%c161, %c0_13] : memref<195x128xf32, #tpu.memory_space<vmem>>, vector<32x128xf32>
    %cst_14 = arith.constant dense<0.000000e+00> : vector<8x128xf32>
    %16 = tpu.matmul %14, %15, %cst_14 {dimension_numbers = #tpu.dot_dimension_numbers<[1], [0], [0], [1], [0, 0, 1, 1], [], []>} : vector<8x32xf32>, vector<32x128xf32>, vector<8x128xf32> -> vector<8x128xf32>
    %17 = arith.addf %13, %16 : vector<8x128xf32>
    %c193 = arith.constant 193 : index
    %c0_15 = arith.constant 0 : index
    %18 = vector.load %arg5[%c193, %c0_15] : memref<195x128xf32, #tpu.memory_space<vmem>>, vector<1x128xf32>
    %19 = vector.broadcast %18 : vector<1x128xf32> to vector<8x128xf32>
    %20 = arith.addf %17, %19 : vector<8x128xf32>
    %21 = vector.extract_strided_slice %20 {offsets = [0, 0], sizes = [8, 32], strides = [1, 1]} : vector<8x128xf32> to vector<8x32xf32>
    %cst_16 = arith.constant 5.000000e-01 : f32
    %22 = vector.broadcast %cst_16 : f32 to vector<8x32xf32>
    %23 = arith.mulf %22, %21 : vector<8x32xf32>
    %24 = math.tanh %23 : vector<8x32xf32>
    %cst_17 = arith.constant 1.000000e+00 : f32
    %25 = vector.broadcast %cst_17 : f32 to vector<8x32xf32>
    %26 = arith.addf %24, %25 : vector<8x32xf32>
    %cst_18 = arith.constant 5.000000e-01 : f32
    %27 = vector.broadcast %cst_18 : f32 to vector<8x32xf32>
    %28 = arith.mulf %27, %26 : vector<8x32xf32>
    %29 = vector.extract_strided_slice %20 {offsets = [0, 32], sizes = [8, 32], strides = [1, 1]} : vector<8x128xf32> to vector<8x32xf32>
    %cst_19 = arith.constant 5.000000e-01 : f32
    %30 = vector.broadcast %cst_19 : f32 to vector<8x32xf32>
    %31 = arith.mulf %30, %29 : vector<8x32xf32>
    %32 = math.tanh %31 : vector<8x32xf32>
    %cst_20 = arith.constant 1.000000e+00 : f32
    %33 = vector.broadcast %cst_20 : f32 to vector<8x32xf32>
    %34 = arith.addf %32, %33 : vector<8x32xf32>
    %cst_21 = arith.constant 5.000000e-01 : f32
    %35 = vector.broadcast %cst_21 : f32 to vector<8x32xf32>
    %36 = arith.mulf %35, %34 : vector<8x32xf32>
    %37 = vector.extract_strided_slice %20 {offsets = [0, 64], sizes = [8, 32], strides = [1, 1]} : vector<8x128xf32> to vector<8x32xf32>
    %38 = math.tanh %37 : vector<8x32xf32>
    %39 = vector.extract_strided_slice %20 {offsets = [0, 96], sizes = [8, 32], strides = [1, 1]} : vector<8x128xf32> to vector<8x32xf32>
    %cst_22 = arith.constant 5.000000e-01 : f32
    %40 = vector.broadcast %cst_22 : f32 to vector<8x32xf32>
    %41 = arith.mulf %40, %39 : vector<8x32xf32>
    %42 = math.tanh %41 : vector<8x32xf32>
    %cst_23 = arith.constant 1.000000e+00 : f32
    %43 = vector.broadcast %cst_23 : f32 to vector<8x32xf32>
    %44 = arith.addf %42, %43 : vector<8x32xf32>
    %cst_24 = arith.constant 5.000000e-01 : f32
    %45 = vector.broadcast %cst_24 : f32 to vector<8x32xf32>
    %46 = arith.mulf %45, %44 : vector<8x32xf32>
    %c0_25 = arith.constant 0 : index
    %c0_26 = arith.constant 0 : index
    %47 = vector.load %arg4[%c0_25, %c0_26] : memref<8x32xf32, #tpu.memory_space<vmem>>, vector<8x32xf32>
    %48 = arith.mulf %36, %47 : vector<8x32xf32>
    %49 = arith.mulf %28, %38 : vector<8x32xf32>
    %50 = arith.addf %48, %49 : vector<8x32xf32>
    %51 = math.tanh %50 : vector<8x32xf32>
    %52 = arith.mulf %46, %51 : vector<8x32xf32>
    %c194 = arith.constant 194 : index
    %c0_27 = arith.constant 0 : index
    %53 = vector.load %arg5[%c194, %c0_27] : memref<195x128xf32, #tpu.memory_space<vmem>>, vector<1x32xf32>
    %c194_28 = arith.constant 194 : index
    %c32_29 = arith.constant 32 : index
    %54 = vector.load %arg5[%c194_28, %c32_29] : memref<195x128xf32, #tpu.memory_space<vmem>>, vector<1x1xf32>
    %55 = vector.broadcast %53 : vector<1x32xf32> to vector<8x32xf32>
    %56 = arith.mulf %52, %55 : vector<8x32xf32>
    %cst_30 = arith.constant dense<0.000000e+00> : vector<8xf32>
    %57 = vector.multi_reduction <add>, %56, %cst_30 [1] : vector<8x32xf32> to vector<8xf32>
    %58 = vector.shape_cast %57 : vector<8xf32> to vector<8x1xf32>
    %59 = vector.broadcast %54 : vector<1x1xf32> to vector<8x1xf32>
    %60 = arith.addf %58, %59 : vector<8x1xf32>
    %cst_31 = arith.constant 5.000000e-01 : f32
    %61 = vector.broadcast %cst_31 : f32 to vector<8x1xf32>
    %62 = arith.mulf %61, %60 : vector<8x1xf32>
    %63 = math.tanh %62 : vector<8x1xf32>
    %cst_32 = arith.constant 1.000000e+00 : f32
    %64 = vector.broadcast %cst_32 : f32 to vector<8x1xf32>
    %65 = arith.addf %63, %64 : vector<8x1xf32>
    %cst_33 = arith.constant 5.000000e-01 : f32
    %66 = vector.broadcast %cst_33 : f32 to vector<8x1xf32>
    %67 = arith.mulf %66, %65 : vector<8x1xf32>
    %cst_34 = arith.constant 0.000000e+00 : f32
    %68 = vector.broadcast %cst_34 : f32 to vector<8x128xf32>
    %c0_35 = arith.constant 0 : index
    %c0_36 = arith.constant 0 : index
    %69 = vector.load %arg6[%c0_35, %c0_36] : memref<8x128xf32, #tpu.memory_space<vmem>>, vector<8x128xf32>
    tpu.vector_store %arg6[%c0_35, %c0_36], %68 {strides = array<i32>} : memref<8x128xf32, #tpu.memory_space<vmem>>, vector<8x128xf32>,
    %c0_37 = arith.constant 0 : index
    %c0_38 = arith.constant 0 : index
    %70 = vector.load %arg6[%c0_37, %c0_38] : memref<8x128xf32, #tpu.memory_space<vmem>>, vector<8x32xf32>
    tpu.vector_store %arg6[%c0_37, %c0_38], %52 {strides = array<i32>} : memref<8x128xf32, #tpu.memory_space<vmem>>, vector<8x32xf32>,
    %c0_39 = arith.constant 0 : index
    %c32_40 = arith.constant 32 : index
    %71 = vector.load %arg6[%c0_39, %c32_40] : memref<8x128xf32, #tpu.memory_space<vmem>>, vector<8x32xf32>
    tpu.vector_store %arg6[%c0_39, %c32_40], %50 {strides = array<i32>} : memref<8x128xf32, #tpu.memory_space<vmem>>, vector<8x32xf32>,
    %c0_41 = arith.constant 0 : index
    %c64 = arith.constant 64 : index
    %72 = vector.load %arg6[%c0_41, %c64] : memref<8x128xf32, #tpu.memory_space<vmem>>, vector<8x1xf32>
    tpu.vector_store %arg6[%c0_41, %c64], %67 {strides = array<i32>} : memref<8x128xf32, #tpu.memory_space<vmem>>, vector<8x1xf32>,
    return
  }
  func.func @transform_0(%arg0: i32) -> (i32, i32) {
    %c0_i32 = arith.constant 0 : i32
    %c0_i32_0 = arith.constant 0 : i32
    return %arg0, %c0_i32 : i32, i32
  }
  func.func @transform_1(%arg0: i32) -> (i32, i32) {
    %c0_i32 = arith.constant 0 : i32
    %c0_i32_0 = arith.constant 0 : i32
    return %arg0, %c0_i32 : i32, i32
  }
  func.func @transform_2(%arg0: i32) -> (i32, i32) {
    %c0_i32 = arith.constant 0 : i32
    %c0_i32_0 = arith.constant 0 : i32
    return %arg0, %c0_i32 : i32, i32
  }
  func.func @transform_3(%arg0: i32) -> (i32, i32) {
    %c0_i32 = arith.constant 0 : i32
    %c0_i32_0 = arith.constant 0 : i32
    return %arg0, %c0_i32 : i32, i32
  }
  func.func @transform_4(%arg0: i32) -> (i32, i32) {
    %c0_i32 = arith.constant 0 : i32
    %c0_i32_0 = arith.constant 0 : i32
    %c0_i32_1 = arith.constant 0 : i32
    return %c0_i32, %c0_i32_0 : i32, i32
  }
  func.func @transform_5(%arg0: i32) -> (i32, i32) {
    %c0_i32 = arith.constant 0 : i32
    %c0_i32_0 = arith.constant 0 : i32
    return %arg0, %c0_i32 : i32, i32
  }
}

</mosaic_0001>

<llo_original>
// kernel: tpu_custom_call.1
$region0: #{tpu_custom_call.1}
  #allocation0 [shape = 'u32[]', space=smem, size = 0x4, offset = 0x4, fixed_abs, tag = 'smem constant byte address 0x4 - core index']
  #allocation1 [shape = 'u32[144,128]{1,0:T(1,128)}', space=vmem, size = 0x12000, scoped, tag = 'internal scratch']
  %s0 = inlined_call_operand.hbm [shape: f32[8,24], index: 0, kind: input, shape index: {}]
  %s1 = inlined_call_operand.hbm [shape: f32[8,8], index: 1, kind: input, shape index: {}]
  %s2 = inlined_call_operand.hbm [shape: f32[8,32], index: 2, kind: input, shape index: {}]
  %s3 = inlined_call_operand.vmem [shape: f32[8,32], index: 3, kind: input, shape index: {}]
  %s4 = inlined_call_operand.hbm [shape: f32[195,128], index: 4, kind: input, shape index: {}]
  %s5 = inlined_call_operand.hbm [shape: f32[8,128], index: 5, kind: output, shape index: {}]
  %s6 = sld [smem:[#allocation0]]
  $region46: #{tpu_custom_call.1} parent=0
    _
  %s8 = ssub.s32 1, %s6
  %s9 = scalar_select 0, %s8, %s6
  $region1: #{tpu_custom_call.1} parent=0
    #allocation2 [shape = 'u8[4096]{0}', space=vmem, size = 0x1000, scoped, tag = 'input window, operand 0, single buffered']
    #allocation3 [shape = 's32[1]{0}', space=sflag, size = 0x4, scoped, tag = 'scoped memory for tpu_custom_call.1']
    #allocation4 [shape = 's32[1]{0}', space=sflag, size = 0x4, scoped, tag = 'scoped memory for tpu_custom_call.1']
    #allocation5 [shape = 'u8[4096]{0}', space=vmem, size = 0x1000, scoped, tag = 'input window, operand 1, single buffered']
    #allocation6 [shape = 's32[1]{0}', space=sflag, size = 0x4, scoped, tag = 'scoped memory for tpu_custom_call.1']
    #allocation7 [shape = 'u8[4096]{0}', space=vmem, size = 0x1000, scoped, tag = 'input window, operand 2, single buffered']
    #allocation8 [shape = 'u8[102400]{0}', space=vmem, size = 0x19000, scoped, tag = 'input window, operand 4, single buffered']
    #allocation9 [shape = 's32[1]{0}', space=sflag, size = 0x4, scoped, tag = 'scoped memory for tpu_custom_call.1']
    #allocation10 [shape = 'u8[4096]{0}', space=vmem, size = 0x1000, scoped, tag = 'output window, operand 0, single buffered']
    %10 = vsyncpa [#allocation3], 0
    %11 = vsyncpa [#allocation6], 0
    %12 = vsyncpa [#allocation9], 0
    %13 = vsyncpa [#allocation4], 0
    // Predicated region
    $region2: #{tpu_custom_call.1} parent=1 // pred_check
      _
    $region3: #{tpu_custom_call.1} parent=1 // pred_check_branch
      %15 = sbr.rel (0) target = $region5
    $region4: #{tpu_custom_call.1} parent=1 // pred_region
      %s17 = ssub.s32 128, 128
      %18 = vsyncadd [#allocation3], %s17
      %s20 = sshll.u32 [#allocation2], 4
      %s21 = int_to_ptr.vmem [resolvable:$true] %s20
      %23 = dma.hbm_to_vmem [thread:$0]  %s0, 128, %s21, [#allocation3]
    $region5: #{tpu_custom_call.1} parent=1 // pred_fallthru
      _
    // Predicated region
    $region6: #{tpu_custom_call.1} parent=1 // pred_check
      _
    $region7: #{tpu_custom_call.1} parent=1 // pred_check_branch
      %25 = sbr.rel (0) target = $region9
    $region8: #{tpu_custom_call.1} parent=1 // pred_region
      %s27 = ssub.s32 128, 128
      %28 = vsyncadd [#allocation6], %s27
      %s30 = sshll.u32 [#allocation5], 4
      %s31 = int_to_ptr.vmem [resolvable:$true] %s30
      %33 = dma.hbm_to_vmem [thread:$0]  %s1, 128, %s31, [#allocation6]
    $region9: #{tpu_custom_call.1} parent=1 // pred_fallthru
      _
    // Predicated region
    $region10: #{tpu_custom_call.1} parent=1 // pred_check
      _
    $region11: #{tpu_custom_call.1} parent=1 // pred_check_branch
      %35 = sbr.rel (0) target = $region13
    $region12: #{tpu_custom_call.1} parent=1 // pred_region
      %s37 = ssub.s32 128, 128
      %38 = vsyncadd [#allocation6], %s37
      %s40 = sshll.u32 [#allocation7], 4
      %s41 = int_to_ptr.vmem [resolvable:$true] %s40
      %43 = dma.hbm_to_vmem [thread:$0]  %s2, 128, %s41, [#allocation6]
    $region13: #{tpu_custom_call.1} parent=1 // pred_fallthru
      _
    // Predicated region
    $region14: #{tpu_custom_call.1} parent=1 // pred_check
      _
    $region15: #{tpu_custom_call.1} parent=1 // pred_check_branch
      %45 = sbr.rel (0) target = $region17
    $region16: #{tpu_custom_call.1} parent=1 // pred_region
      _
    $region17: #{tpu_custom_call.1} parent=1 // pred_fallthru
      _
    // Predicated region
    $region18: #{tpu_custom_call.1} parent=1 // pred_check
      _
    $region19: #{tpu_custom_call.1} parent=1 // pred_check_branch
      %47 = sbr.rel (0) target = $region21
    $region20: #{tpu_custom_call.1} parent=1 // pred_region
      %s49 = ssub.s32 3200, 3200
      %50 = vsyncadd [#allocation9], %s49
      %s51 = sshll.u32 [#allocation8], 4
      %s52 = int_to_ptr.vmem [resolvable:$true] %s51
      %57 = dma.hbm_to_vmem [thread:$0]  %s4, 3200, %s52, [#allocation9], 128, 128, 8
    $region21: #{tpu_custom_call.1} parent=1 // pred_fallthru
      _
    // Predicated region
    $region22: #{tpu_custom_call.1} parent=1 // pred_check
      _
    $region23: #{tpu_custom_call.1} parent=1 // pred_check_branch
      %59 = sbr.rel (0) target = $region25
    $region24: #{tpu_custom_call.1} parent=1 // pred_region
      %60 = dma.done [#allocation3], 128
    $region25: #{tpu_custom_call.1} parent=1 // pred_fallthru
      _
    // Predicated region
    $region26: #{tpu_custom_call.1} parent=1 // pred_check
      _
    $region27: #{tpu_custom_call.1} parent=1 // pred_check_branch
      %62 = sbr.rel (0) target = $region29
    $region28: #{tpu_custom_call.1} parent=1 // pred_region
      %63 = dma.done [#allocation6], 128
    $region29: #{tpu_custom_call.1} parent=1 // pred_fallthru
      _
    // Predicated region
    $region30: #{tpu_custom_call.1} parent=1 // pred_check
      _
    $region31: #{tpu_custom_call.1} parent=1 // pred_check_branch
      %65 = sbr.rel (0) target = $region33
    $region32: #{tpu_custom_call.1} parent=1 // pred_region
      %66 = dma.done [#allocation6], 128
    $region33: #{tpu_custom_call.1} parent=1 // pred_fallthru
      _
    // Predicated region
    $region34: #{tpu_custom_call.1} parent=1 // pred_check
      _
    $region35: #{tpu_custom_call.1} parent=1 // pred_check_branch
      %68 = sbr.rel (0) target = $region37
    $region36: #{tpu_custom_call.1} parent=1 // pred_region
      %69 = dma.done [#allocation9], 3200
    $region37: #{tpu_custom_call.1} parent=1 // pred_fallthru
      _
    %v70 = vld [vmem:[#allocation2] sm:$0xff]
    %v71 = vld [vmem:[#allocation8] sm:$0xff]
    %v72 = vld [vmem:[#allocation8 + $0x8] sm:$0xff]
    %v73 = vld [vmem:[#allocation8 + $0x10] sm:$0xff]
    %v74 = vld [vmem:[#allocation5] sm:$0xff]
    %v75 = vld [vmem:[#allocation8 + $0x18] sm:$0xff]
    %vm76 = vcmask 64512
    %v78 = vsel %vm76, %v74, 0
    %80 = vmatprep.subr.mxu0 0.0
    %81 = vmatpush1.msra.mxu0 %v75
    %82 = vmatprep.subr.mxu0 0.0
    %83 = vmatpush1.msra.mxu0 0.0
    %84 = vmatprep.subr.mxu0 0.0
    %85 = vmatpush1.msra.mxu0 0.0
    %86 = vmatprep.subr.mxu0 0.0
    %87 = vmatpush1.msra.mxu0 0.0
    %88 = vmatprep.subr.mxu0 0.0
    %89 = vmatpush1.msra.mxu0 0.0
    %90 = vmatprep.subr.mxu0 0.0
    %91 = vmatpush1.msra.mxu0 0.0
    %92 = vmatprep.subr.mxu0 0.0
    %93 = vmatpush1.msra.mxu0 0.0
    %94 = vmatprep.subr.mxu0 0.0
    %95 = vmatpush1.msra.mxu0 0.0
    %96 = vmatprep.subr.mxu0 0.0
    %97 = vmatpush1.msra.mxu0 0.0
    %98 = vmatprep.subr.mxu0 0.0
    %99 = vmatpush1.msra.mxu0 0.0
    %100 = vmatprep.subr.mxu0 0.0
    %101 = vmatpush1.msra.mxu0 0.0
    %102 = vmatprep.subr.mxu0 0.0
    %103 = vmatpush1.msra.mxu0 0.0
    %104 = vmatprep.subr.mxu0 0.0
    %105 = vmatpush1.msra.mxu0 0.0
    %106 = vmatprep.subr.mxu0 0.0
    %107 = vmatpush1.msra.mxu0 0.0
    %108 = vmatprep.subr.mxu0 0.0
    %109 = vmatpush1.msra.mxu0 0.0
    %110 = vmatprep.subr.mxu0 0.0
    %111 = vmatpush1.msra.mxu0 0.0
    %112 = vmatprep.subr.mxu0 0.0
    %113 = vmatpush1.msra.mxu0 0.0
    %114 = vmatprep.subr.mxu0 0.0
    %115 = vmatpush1.msra.mxu0 0.0
    %116 = vmatprep.subr.mxu0 0.0
    %117 = vmatpush1.msra.mxu0 0.0
    %118 = vmatprep.subr.mxu0 0.0
    %119 = vmatpush1.msra.mxu0 0.0
    %120 = vmatprep.subr.mxu0 0.0
    %121 = vmatpush1.msra.mxu0 0.0
    %122 = vmatprep.subr.mxu0 0.0
    %123 = vmatpush1.msra.mxu0 0.0
    %124 = vmatprep.subr.mxu0 0.0
    %125 = vmatpush1.msra.mxu0 0.0
    %126 = vmatprep.subr.mxu0 0.0
    %127 = vmatpush1.msra.mxu0 0.0
    %128 = vmatprep.subr.mxu0 0.0
    %129 = vmatpush1.msra.mxu0 0.0
    %130 = vmatprep.subr.mxu0 0.0
    %131 = vmatpush1.msra.mxu0 0.0
    %132 = vmatprep.subr.mxu0 0.0
    %133 = vmatpush1.msra.mxu0 0.0
    %134 = vmatprep.subr.mxu0 0.0
    %135 = vmatpush1.msra.mxu0 0.0
    %136 = vmatprep.subr.mxu0 0.0
    %137 = vmatpush1.msra.mxu0 0.0
    %138 = vmatprep.subr.mxu0 0.0
    %139 = vmatpush1.msra.mxu0 0.0
    %140 = vmatprep.subr.mxu0 0.0
    %141 = vmatpush1.msra.mxu0 0.0
    %142 = vmatprep.subr.mxu0 0.0
    %143 = vmatpush1.msra.mxu0 0.0
    %144 = vmatprep.mubr.f32.mxu0 0.0
    %145 = vmatmul.mubr.f32.gmra.mrb[0].mxu0 %v78
    %v146 = vpop.f32.mrb[0].mxu0
    %v147 = vadd.f32 0.0, %v146
    %v148 = vpop.f32.mrb[0].mxu0
    %149 = vdwg.mxu0
    %vm150 = vcmask 195584
    %v152 = vsel %vm150, %v70, 0
    %154 = vmatprep.subr.mxu0 0.0
    %155 = vmatpush1.msra.mxu0 %v71
    %156 = vmatprep.subr.mxu0 0.0
    %157 = vmatpush1.msra.mxu0 %v72
    %158 = vmatprep.subr.mxu0 0.0
    %159 = vmatpush1.msra.mxu0 %v73
    %160 = vmatprep.subr.mxu0 0.0
    %161 = vmatpush1.msra.mxu0 0.0
    %162 = vmatprep.subr.mxu0 0.0
    %163 = vmatpush1.msra.mxu0 0.0
    %164 = vmatprep.subr.mxu0 0.0
    %165 = vmatpush1.msra.mxu0 0.0
    %166 = vmatprep.subr.mxu0 0.0
    %167 = vmatpush1.msra.mxu0 0.0
    %168 = vmatprep.subr.mxu0 0.0
    %169 = vmatpush1.msra.mxu0 0.0
    %170 = vmatprep.subr.mxu0 0.0
    %171 = vmatpush1.msra.mxu0 0.0
    %172 = vmatprep.subr.mxu0 0.0
    %173 = vmatpush1.msra.mxu0 0.0
    %174 = vmatprep.subr.mxu0 0.0
    %175 = vmatpush1.msra.mxu0 0.0
    %176 = vmatprep.subr.mxu0 0.0
    %177 = vmatpush1.msra.mxu0 0.0
    %178 = vmatprep.subr.mxu0 0.0
    %179 = vmatpush1.msra.mxu0 0.0
    %180 = vmatprep.subr.mxu0 0.0
    %181 = vmatpush1.msra.mxu0 0.0
    %182 = vmatprep.subr.mxu0 0.0
    %183 = vmatpush1.msra.mxu0 0.0
    %184 = vmatprep.subr.mxu0 0.0
    %185 = vmatpush1.msra.mxu0 0.0
    %186 = vmatprep.subr.mxu0 0.0
    %187 = vmatpush1.msra.mxu0 0.0
    %188 = vmatprep.subr.mxu0 0.0
    %189 = vmatpush1.msra.mxu0 0.0
    %190 = vmatprep.subr.mxu0 0.0
    %191 = vmatpush1.msra.mxu0 0.0
    %192 = vmatprep.subr.mxu0 0.0
    %193 = vmatpush1.msra.mxu0 0.0
    %194 = vmatprep.subr.mxu0 0.0
    %195 = vmatpush1.msra.mxu0 0.0
    %196 = vmatprep.subr.mxu0 0.0
    %197 = vmatpush1.msra.mxu0 0.0
    %198 = vmatprep.subr.mxu0 0.0
    %199 = vmatpush1.msra.mxu0 0.0
    %200 = vmatprep.subr.mxu0 0.0
    %201 = vmatpush1.msra.mxu0 0.0
    %202 = vmatprep.subr.mxu0 0.0
    %203 = vmatpush1.msra.mxu0 0.0
    %204 = vmatprep.subr.mxu0 0.0
    %205 = vmatpush1.msra.mxu0 0.0
    %206 = vmatprep.subr.mxu0 0.0
    %207 = vmatpush1.msra.mxu0 0.0
    %208 = vmatprep.subr.mxu0 0.0
    %209 = vmatpush1.msra.mxu0 0.0
    %210 = vmatprep.subr.mxu0 0.0
    %211 = vmatpush1.msra.mxu0 0.0
    %212 = vmatprep.subr.mxu0 0.0
    %213 = vmatpush1.msra.mxu0 0.0
    %214 = vmatprep.subr.mxu0 0.0
    %215 = vmatpush1.msra.mxu0 0.0
    %216 = vmatprep.subr.mxu0 0.0
    %217 = vmatpush1.msra.mxu0 0.0
    %218 = vmatprep.mubr.f32.mxu0 0.0
    %219 = vmatmul.mubr.f32.gmra.mrb[0].mxu0 %v152
    %v220 = vpop.f32.mrb[0].mxu0
    %v221 = vadd.f32 %v147, %v220
    %v222 = vpop.f32.mrb[0].mxu0
    %223 = vdwg.mxu0
    %v224 = vld [vmem:[#allocation8 + $0x20] sm:$0x1]
    %v225 = vlaneseq
    %v226 = vshrl.u32 %v225, 7
    %v227 = vsub.s32 0, %v226
    %v228 = vrot.slane %v224, %v227
    %v229 = vadd.f32 %v221, %v228
    %v230 = vmax.f32 %v229, 0.0
    %v231 = vld [vmem:[#allocation8 + $0x21] sm:$0xff]
    %v232 = vld [vmem:[#allocation8 + $0x29] sm:$0xff]
    %v233 = vld [vmem:[#allocation8 + $0x31] sm:$0xff]
    %v234 = vld [vmem:[#allocation8 + $0x39] sm:$0xff]
    %v235 = vld [vmem:[#allocation8 + $0x41] sm:$0xff]
    %v236 = vld [vmem:[#allocation8 + $0x49] sm:$0xff]
    %v237 = vld [vmem:[#allocation8 + $0x51] sm:$0xff]
    %v238 = vld [vmem:[#allocation8 + $0x59] sm:$0xff]
    %v239 = vld [vmem:[#allocation8 + $0x61] sm:$0xff]
    %v240 = vld [vmem:[#allocation8 + $0x69] sm:$0xff]
    %v241 = vld [vmem:[#allocation8 + $0x71] sm:$0xff]
    %v242 = vld [vmem:[#allocation8 + $0x79] sm:$0xff]
    %v243 = vld [vmem:[#allocation8 + $0x81] sm:$0xff]
    %v244 = vld [vmem:[#allocation8 + $0x89] sm:$0xff]
    %v245 = vld [vmem:[#allocation8 + $0x91] sm:$0xff]
    %v246 = vld [vmem:[#allocation8 + $0x99] sm:$0xff]
    %v247 = vld [vmem:[#allocation7] sm:$0xff]
    %v248 = vld [vmem:[#allocation8 + $0xa1] sm:$0xff]
    %v249 = vld [vmem:[#allocation8 + $0xa9] sm:$0xff]
    %v250 = vld [vmem:[#allocation8 + $0xb1] sm:$0xff]
    %v251 = vld [vmem:[#allocation8 + $0xb9] sm:$0xff]
    %vm252 = vcmask 261120
    %v254 = vsel %vm252, %v247, 0
    %256 = vmatprep.subr.mxu0 0.0
    %257 = vmatpush1.msra.mxu0 %v248
    %258 = vmatprep.subr.mxu0 0.0
    %259 = vmatpush1.msra.mxu0 %v249
    %260 = vmatprep.subr.mxu0 0.0
    %261 = vmatpush1.msra.mxu0 %v250
    %262 = vmatprep.subr.mxu0 0.0
    %263 = vmatpush1.msra.mxu0 %v251
    %264 = vmatprep.subr.mxu0 0.0
    %265 = vmatpush1.msra.mxu0 0.0
    %266 = vmatprep.subr.mxu0 0.0
    %267 = vmatpush1.msra.mxu0 0.0
    %268 = vmatprep.subr.mxu0 0.0
    %269 = vmatpush1.msra.mxu0 0.0
    %270 = vmatprep.subr.mxu0 0.0
    %271 = vmatpush1.msra.mxu0 0.0
    %272 = vmatprep.subr.mxu0 0.0
    %273 = vmatpush1.msra.mxu0 0.0
    %274 = vmatprep.subr.mxu0 0.0
    %275 = vmatpush1.msra.mxu0 0.0
    %276 = vmatprep.subr.mxu0 0.0
    %277 = vmatpush1.msra.mxu0 0.0
    %278 = vmatprep.subr.mxu0 0.0
    %279 = vmatpush1.msra.mxu0 0.0
    %280 = vmatprep.subr.mxu0 0.0
    %281 = vmatpush1.msra.mxu0 0.0
    %282 = vmatprep.subr.mxu0 0.0
    %283 = vmatpush1.msra.mxu0 0.0
    %284 = vmatprep.subr.mxu0 0.0
    %285 = vmatpush1.msra.mxu0 0.0
    %286 = vmatprep.subr.mxu0 0.0
    %287 = vmatpush1.msra.mxu0 0.0
    %288 = vmatprep.subr.mxu0 0.0
    %289 = vmatpush1.msra.mxu0 0.0
    %290 = vmatprep.subr.mxu0 0.0
    %291 = vmatpush1.msra.mxu0 0.0
    %292 = vmatprep.subr.mxu0 0.0
    %293 = vmatpush1.msra.mxu0 0.0
    %294 = vmatprep.subr.mxu0 0.0
    %295 = vmatpush1.msra.mxu0 0.0
    %296 = vmatprep.subr.mxu0 0.0
    %297 = vmatpush1.msra.mxu0 0.0
    %298 = vmatprep.subr.mxu0 0.0
    %299 = vmatpush1.msra.mxu0 0.0
    %300 = vmatprep.subr.mxu0 0.0
    %301 = vmatpush1.msra.mxu0 0.0
    %302 = vmatprep.subr.mxu0 0.0
    %303 = vmatpush1.msra.mxu0 0.0
    %304 = vmatprep.subr.mxu0 0.0
    %305 = vmatpush1.msra.mxu0 0.0
    %306 = vmatprep.subr.mxu0 0.0
    %307 = vmatpush1.msra.mxu0 0.0
    %308 = vmatprep.subr.mxu0 0.0
    %309 = vmatpush1.msra.mxu0 0.0
    %310 = vmatprep.subr.mxu0 0.0
    %311 = vmatpush1.msra.mxu0 0.0
    %312 = vmatprep.subr.mxu0 0.0
    %313 = vmatpush1.msra.mxu0 0.0
    %314 = vmatprep.subr.mxu0 0.0
    %315 = vmatpush1.msra.mxu0 0.0
    %316 = vmatprep.subr.mxu0 0.0
    %317 = vmatpush1.msra.mxu0 0.0
    %318 = vmatprep.subr.mxu0 0.0
    %319 = vmatpush1.msra.mxu0 0.0
    %320 = vmatprep.mubr.f32.mxu0 0.0
    %321 = vmatmul.mubr.f32.gmra.mrb[0].mxu0 %v254
    %v322 = vpop.f32.mrb[0].mxu0
    %v323 = vadd.f32 0.0, %v322
    %v324 = vpop.f32.mrb[0].mxu0
    %325 = vdwg.mxu0
    %326 = vmatprep.subr.mxu0 0.0
    %327 = vmatpush1.msra.mxu0 %v231
    %328 = vmatprep.subr.mxu0 0.0
    %329 = vmatpush1.msra.mxu0 %v232
    %330 = vmatprep.subr.mxu0 0.0
    %331 = vmatpush1.msra.mxu0 %v233
    %332 = vmatprep.subr.mxu0 0.0
    %333 = vmatpush1.msra.mxu0 %v234
    %334 = vmatprep.subr.mxu0 0.0
    %335 = vmatpush1.msra.mxu0 %v235
    %336 = vmatprep.subr.mxu0 0.0
    %337 = vmatpush1.msra.mxu0 %v236
    %338 = vmatprep.subr.mxu0 0.0
    %339 = vmatpush1.msra.mxu0 %v237
    %340 = vmatprep.subr.mxu0 0.0
    %341 = vmatpush1.msra.mxu0 %v238
    %342 = vmatprep.subr.mxu0 0.0
    %343 = vmatpush1.msra.mxu0 %v239
    %344 = vmatprep.subr.mxu0 0.0
    %345 = vmatpush1.msra.mxu0 %v240
    %346 = vmatprep.subr.mxu0 0.0
    %347 = vmatpush1.msra.mxu0 %v241
    %348 = vmatprep.subr.mxu0 0.0
    %349 = vmatpush1.msra.mxu0 %v242
    %350 = vmatprep.subr.mxu0 0.0
    %351 = vmatpush1.msra.mxu0 %v243
    %352 = vmatprep.subr.mxu0 0.0
    %353 = vmatpush1.msra.mxu0 %v244
    %354 = vmatprep.subr.mxu0 0.0
    %355 = vmatpush1.msra.mxu0 %v245
    %356 = vmatprep.subr.mxu0 0.0
    %357 = vmatpush1.msra.mxu0 %v246
    %358 = vmatprep.subr.mxu0 0.0
    %359 = vmatpush1.msra.mxu0 0.0
    %360 = vmatprep.subr.mxu0 0.0
    %361 = vmatpush1.msra.mxu0 0.0
    %362 = vmatprep.subr.mxu0 0.0
    %363 = vmatpush1.msra.mxu0 0.0
    %364 = vmatprep.subr.mxu0 0.0
    %365 = vmatpush1.msra.mxu0 0.0
    %366 = vmatprep.subr.mxu0 0.0
    %367 = vmatpush1.msra.mxu0 0.0
    %368 = vmatprep.subr.mxu0 0.0
    %369 = vmatpush1.msra.mxu0 0.0
    %370 = vmatprep.subr.mxu0 0.0
    %371 = vmatpush1.msra.mxu0 0.0
    %372 = vmatprep.subr.mxu0 0.0
    %373 = vmatpush1.msra.mxu0 0.0
    %374 = vmatprep.subr.mxu0 0.0
    %375 = vmatpush1.msra.mxu0 0.0
    %376 = vmatprep.subr.mxu0 0.0
    %377 = vmatpush1.msra.mxu0 0.0
    %378 = vmatprep.subr.mxu0 0.0
    %379 = vmatpush1.msra.mxu0 0.0
    %380 = vmatprep.subr.mxu0 0.0
    %381 = vmatpush1.msra.mxu0 0.0
    %382 = vmatprep.subr.mxu0 0.0
    %383 = vmatpush1.msra.mxu0 0.0
    %384 = vmatprep.subr.mxu0 0.0
    %385 = vmatpush1.msra.mxu0 0.0
    %386 = vmatprep.subr.mxu0 0.0
    %387 = vmatpush1.msra.mxu0 0.0
    %388 = vmatprep.subr.mxu0 0.0
    %389 = vmatpush1.msra.mxu0 0.0
    %390 = vmatprep.mubr.f32.mxu0 0.0
    %391 = vmatmul.mubr.f32.gmra.mrb[0].mxu0 %v230
    %v392 = vpop.f32.mrb[0].mxu0
    %v393 = vadd.f32 %v323, %v392
    %v394 = vpop.f32.mrb[0].mxu0
    %395 = vdwg.mxu0
    %v396 = vld [vmem:[#allocation8 + $0xc1] sm:$0x1]
    %v397 = vlaneseq
    %v398 = vshrl.u32 %v397, 7
    %v399 = vsub.s32 0, %v398
    %v400 = vrot.slane %v396, %v399
    %v401 = vadd.f32 %v393, %v400
    %v402 = vmul.f32 %v401, 0.5
    %v403 = vtanh.pop %v402
    %v404 = vadd.f32 %v403, 1.0
    %v405 = vmul.f32 %v404, 0.5
    %v406 = vtanh.pop %v401
    %v407 = vld [vmem:[%s3] sm:$0xff]
    %409 = vrot.lane.b32.xlu0 %v407, 32
    %v410 = vpop.permute.xlu0 %409
    %v412 = vmul.f32 %v405, %v410
    %414 = vrot.lane.b32.xlu0 %v406, 64
    %v415 = vpop.permute.xlu0 %414
    %v417 = vmul.f32 %v405, %v415
    %419 = vrot.lane.b32.xlu0 %v417, 32
    %v420 = vpop.permute.xlu0 %419
    %v422 = vadd.f32 %v412, %v420
    %v423 = vtanh.pop %v422
    %425 = vrot.lane.b32.xlu0 %v423, 64
    %v426 = vpop.permute.xlu0 %425
    %v428 = vmul.f32 %v405, %v426
    %v429 = vld [vmem:[#allocation8 + $0xc2] sm:$0x1]
    %v430 = vlaneseq
    %v431 = vshrl.u32 %v430, 7
    %v432 = vsub.s32 0, %v431
    %v433 = vrot.slane %v429, %v432
    %435 = vrot.lane.b32.xlu0 %v433, 96
    %v436 = vpop.permute.xlu0 %435
    %v438 = vmul.f32 %v428, %v436
    %440 = vrot.lane.b32.xlu0 %v438, 32
    %v441 = vpop.permute.xlu0 %440
    %v443 = vsel %vm252, %v441, 0.0
    %444 = vadd.xlane.f32.xlu0 %v443
    %v445 = vpop.xlane.xlu0 %444
    %v446 = vadd.f32 %v445, %v433
    %v447 = vmul.f32 %v446, 0.5
    %v448 = vtanh.pop %v447
    %v449 = vadd.f32 %v448, 1.0
    %v450 = vmul.f32 %v449, 0.5
    %451 = vst [vmem:[#allocation10] sm:$0xff] 0.0
    %453 = vrot.lane.b32.xlu0 %v428, 32
    %v454 = vpop.permute.xlu0 %453
    %456 = vst.msk [vmem:[#allocation10] sm:$0xff] %vm252, %v454
    %vm457 = vcmask 523520
    %458 = vst.msk [vmem:[#allocation10] sm:$0xff] %vm457, %v422
    %460 = vrot.lane.b32.xlu0 %v450, 32
    %v461 = vpop.permute.xlu0 %460
    %vm463 = vcmask 531968
    %464 = vst.msk [vmem:[#allocation10] sm:$0xff] %vm463, %v461
    // Predicated region
    $region38: #{tpu_custom_call.1} parent=1 // pred_check
      _
    $region39: #{tpu_custom_call.1} parent=1 // pred_check_branch
      %466 = sbr.rel (0) target = $region41
    $region40: #{tpu_custom_call.1} parent=1 // pred_region
      %s468 = ssub.s32 128, 128
      %469 = vsyncadd [#allocation4], %s468
      %s471 = sshll.u32 [#allocation10], 4
      %s472 = int_to_ptr.vmem [resolvable:$true] %s471
      %474 = dma.vmem_to_hbm [thread:$0]  %s472, 128, %s5, [#allocation4]
    $region41: #{tpu_custom_call.1} parent=1 // pred_fallthru
      _
    // Predicated region
    $region42: #{tpu_custom_call.1} parent=1 // pred_check
      _
    $region43: #{tpu_custom_call.1} parent=1 // pred_check_branch
      %476 = sbr.rel (0) target = $region45
    $region44: #{tpu_custom_call.1} parent=1 // pred_region
      %477 = dma.done [#allocation4], 128
    $region45: #{tpu_custom_call.1} parent=1 // pred_fallthru
      _
    %478 = vsyncpa [#allocation3], 1
    %479 = vsyncpa [#allocation6], 1
    %480 = vsyncpa [#allocation9], 1
    %481 = vsyncpa [#allocation4], 1

</llo_original>
